<compile_context>
chip_gen: v6e
topology: v6e:2x2x1
jax: 0.10.0
libtpu: 0.0.40
codegen_flags: <defaults>
</compile_context>

<pallas_src>
import jax
import jax.numpy as jnp
from jax.experimental import pallas as pl
from jax.experimental.pallas import tpu as pltpu  # noqa: F401

D = 512            # hidden size hard-coded by the module (nn.Linear(512, 512))
SCALE = 2.0 ** (-0.5)


# -----------------------------------------------------------------------------
# Pallas kernel: the entire live data path is one sublane-mean + one fused GEMV.
# -----------------------------------------------------------------------------
def qav_kernel(attr_ref, w_ref, b_ref, out_ref):
    # Uniform attention over repeated keys == plain mean over the batch rows,
    # hoisted in front of the (fused) projection.
    abar = jnp.mean(attr_ref[...], axis=0, keepdims=True)              # (1, D) f32

    # Single fused projection: bf16 x bf16 on the MXU, f32 accumulation.
    out_ref[...] = jnp.dot(abar.astype(jnp.bfloat16), w_ref[...],
                           preferred_element_type=jnp.float32) + b_ref[...]


def query_attribute_value_pallas(prompt, attribute, kernel_params):
    """prompt: (A, D) (only its leading dim matters for the output shape),
    attribute: (N, D).  kernel_params: output of prepare_kernel_params().
    Returns the module output, shape (N, A, D), f32."""
    A, d = prompt.shape
    N, d2 = attribute.shape
    assert d == D and d2 == D
    w_fused, b_fused = kernel_params

    args = (attribute, w_fused, b_fused)
    in_specs = [pl.BlockSpec(a.shape, lambda i: (0, 0)) for a in args]

    bytes_accessed = (attribute.size * 4          # f32 attribute in
                      + w_fused.size * 2          # bf16 fused weight in
                      + b_fused.size * 4          # f32 fused bias in
                      + D * 4)                    # f32 row out

    row = pl.pallas_call(
        qav_kernel,
        grid=(1,),
        in_specs=in_specs,
        out_specs=pl.BlockSpec((1, D), lambda i: (0, 0)),
        out_shape=jax.ShapeDtypeStruct((1, D), jnp.float32),
        cost_estimate=pl.CostEstimate(flops=2 * D * D,
                                      transcendentals=0,
                                      bytes_accessed=bytes_accessed),
    )(*args)

    # All (n, a) rows of the module output are identical; broadcast lazily outside.
    return jnp.broadcast_to(row.reshape(1, 1, D), (N, A, D))


# -----------------------------------------------------------------------------
# One-time setup: fuse the two Linear layers offline.  The product is formed in
# f32 and only then cast to bf16 (casting the factors first would ~double the
# quantization error).  Wq/Wk are provably unused by the forward output.
# -----------------------------------------------------------------------------
def prepare_kernel_params(params):
    _wq, _bq, _wk, _bk, wv, bv, wo, bo = params
    wv = wv.astype(jnp.float32)
    wo = wo.astype(jnp.float32)
    w_fused = wv.T @ wo.T                                   # (D, D) f32: Wv^T @ Wout^T
    b_fused = bv.astype(jnp.float32) @ wo.T + bo.astype(jnp.float32)   # (D,) f32
    return (w_fused.astype(jnp.bfloat16),
            b_fused.reshape(1, D).astype(jnp.float32))


# -----------------------------------------------------------------------------
# Pure-JAX reference mirroring the PyTorch module line-by-line (exact f32).
# -----------------------------------------------------------------------------
def query_attribute_value_ref(prompt, attribute, params):
    wq, bq, wk, bk, wv, bv, wo, bo = params
    b = attribute.shape[0]
    q = prompt @ wq.T + bq
    k = attribute @ wk.T + bk
    v = attribute @ wv.T + bv
    k3 = jnp.repeat(k[:, None, :], b, axis=1)               # (N, b, D)
    sim = jnp.einsum('ad,nbd->nab', q, k3) * SCALE
    attn = jax.nn.softmax(sim, axis=-1)
    out = jnp.einsum('nab,bd->nad', attn, v)
    return out @ wo.T + bo


def init_params(key):
    """weights_init: Linear weight ~ N(0, 0.02), bias = 0; (out, in) like torch."""
    keys = jax.random.split(key, 4)
    params = []
    for kk in keys:
        w = 0.02 * jax.random.normal(kk, (D, D), dtype=jnp.float32)
        params.extend([w, jnp.zeros((D,), dtype=jnp.float32)])
    return tuple(params)


if __name__ == "__main__":
    key = jax.random.PRNGKey(0)
    k_prompt, k_attr, k_params = jax.random.split(key, 3)

    A = 8   # number of hard-prompt tokens
    N = 4   # batch size of `attribute`

    prompt = jax.random.normal(k_prompt, (A, D), dtype=jnp.float32)      # hard_prompt
    attribute = jax.random.normal(k_attr, (N, D), dtype=jnp.float32)
    params = init_params(k_params)

    kernel_params = prepare_kernel_params(params)   # hoisted out of the call path

    out = query_attribute_value_pallas(prompt, attribute, kernel_params)
    out = jax.block_until_ready(out)
    assert out.shape == (N, A, D)

    # 1) Kernel math vs the identical fused/bf16 path in plain JAX:
    #    only summation-order differences can remain.
    w_fused, b_fused = kernel_params
    abar = jnp.mean(attribute, axis=0, keepdims=True).astype(jnp.bfloat16)
    row_ref = jnp.dot(abar, w_fused, preferred_element_type=jnp.float32) + b_fused
    assert jnp.allclose(out[0, 0][None, :], row_ref, atol=1e-4, rtol=1e-4), \
        "kernel does not match the fused-path math"

    # 2) End-to-end vs the exact f32 module: differences are bf16 quantization of
    #    the fused weight and of the (1, 512) mean row, well inside budget.
    ref_exact = query_attribute_value_ref(prompt, attribute, params)
    assert jnp.allclose(out, ref_exact, atol=5e-3, rtol=5e-3), \
        "bf16 weight quantization error exceeded budget"

    print("KERNEL_OK")
</pallas_src>

<mosaic_0001>
module attributes {stable_mosaic.version = 11 : i64} {
  func.func @qav_kernel(%arg0: i32, %arg1: memref<4x512xf32, #tpu.memory_space<vmem>>, %arg2: memref<512x512xbf16, #tpu.memory_space<vmem>>, %arg3: memref<1x512xf32, #tpu.memory_space<vmem>>, %arg4: memref<1x512xf32, #tpu.memory_space<vmem>>) attributes {dimension_semantics = [#tpu.dimension_semantics<arbitrary>], iteration_bounds = array<i64: 1>, scalar_prefetch = 0 : i64, scratch_operands = 0 : i64, tpu.core_type = #tpu.core_type<tc>, window_params = [{pipeline_mode = #tpu.pipeline_mode<synchronous>, transform_indices = @transform_0, window_bounds = array<i64: 4, 512>}, {pipeline_mode = #tpu.pipeline_mode<synchronous>, transform_indices = @transform_1, window_bounds = array<i64: 512, 512>}, {pipeline_mode = #tpu.pipeline_mode<synchronous>, transform_indices = @transform_2, window_bounds = array<i64: 1, 512>}, {pipeline_mode = #tpu.pipeline_mode<synchronous>, transform_indices = @transform_3, window_bounds = array<i64: 1, 512>}]} {
    %c0 = arith.constant 0 : index
    %c0_0 = arith.constant 0 : index
    %0 = vector.load %arg1[%c0, %c0_0] : memref<4x512xf32, #tpu.memory_space<vmem>>, vector<4x512xf32>
    %cst = arith.constant dense<0.000000e+00> : vector<512xf32>
    %1 = vector.multi_reduction <add>, %0, %cst [0] : vector<4x512xf32> to vector<512xf32>
    %2 = vector.shape_cast %1 : vector<512xf32> to vector<1x512xf32>
    %cst_1 = arith.constant 4.000000e+00 : f32
    %3 = vector.broadcast %cst_1 : f32 to vector<1x512xf32>
    %4 = arith.divf %2, %3 : vector<1x512xf32>
    %5 = arith.truncf %4 : vector<1x512xf32> to vector<1x512xbf16>
    %c0_2 = arith.constant 0 : index
    %c0_3 = arith.constant 0 : index
    %6 = vector.load %arg2[%c0_2, %c0_3] : memref<512x512xbf16, #tpu.memory_space<vmem>>, vector<512x512xbf16>
    %cst_4 = arith.constant dense<0.000000e+00> : vector<1x512xf32>
    %7 = tpu.matmul %5, %6, %cst_4 {dimension_numbers = #tpu.dot_dimension_numbers<[1], [0], [0], [1], [0, 0, 1, 1], [], []>} : vector<1x512xbf16>, vector<512x512xbf16>, vector<1x512xf32> -> vector<1x512xf32>
    %c0_5 = arith.constant 0 : index
    %c0_6 = arith.constant 0 : index
    %8 = vector.load %arg3[%c0_5, %c0_6] : memref<1x512xf32, #tpu.memory_space<vmem>>, vector<1x512xf32>
    %9 = arith.addf %7, %8 : vector<1x512xf32>
    %c0_7 = arith.constant 0 : index
    %c0_8 = arith.constant 0 : index
    %10 = vector.load %arg4[%c0_7, %c0_8] : memref<1x512xf32, #tpu.memory_space<vmem>>, vector<1x512xf32>
    tpu.vector_store %arg4[%c0_7, %c0_8], %9 {strides = array<i32>} : memref<1x512xf32, #tpu.memory_space<vmem>>, vector<1x512xf32>,
    return
  }
  func.func @transform_0(%arg0: i32) -> (i32, i32) {
    %c0_i32 = arith.constant 0 : i32
    %c0_i32_0 = arith.constant 0 : i32
    %c0_i32_1 = arith.constant 0 : i32
    return %c0_i32, %c0_i32_0 : i32, i32
  }
  func.func @transform_1(%arg0: i32) -> (i32, i32) {
    %c0_i32 = arith.constant 0 : i32
    %c0_i32_0 = arith.constant 0 : i32
    %c0_i32_1 = arith.constant 0 : i32
    return %c0_i32, %c0_i32_0 : i32, i32
  }
  func.func @transform_2(%arg0: i32) -> (i32, i32) {
    %c0_i32 = arith.constant 0 : i32
    %c0_i32_0 = arith.constant 0 : i32
    %c0_i32_1 = arith.constant 0 : i32
    return %c0_i32, %c0_i32_0 : i32, i32
  }
  func.func @transform_3(%arg0: i32) -> (i32, i32) {
    %c0_i32 = arith.constant 0 : i32
    %c0_i32_0 = arith.constant 0 : i32
    %c0_i32_1 = arith.constant 0 : i32
    return %c0_i32, %c0_i32_0 : i32, i32
  }
}

</mosaic_0001>

<llo_original>
// kernel: tpu_custom_call.1
$region0: #{tpu_custom_call.1}
  #allocation0 [shape = 'u32[]', space=smem, size = 0x4, offset = 0x4, fixed_abs, tag = 'smem constant byte address 0x4 - core index']
  #allocation1 [shape = 'u32[144,128]{1,0:T(1,128)}', space=vmem, size = 0x12000, scoped, tag = 'internal scratch']
  %s0 = inlined_call_operand.hbm [shape: f32[4,512], index: 0, kind: input, shape index: {}]
  %s1 = inlined_call_operand.hbm [shape: bf16[512,512], index: 1, kind: input, shape index: {}]
  %s2 = inlined_call_operand.hbm [shape: f32[1,512], index: 2, kind: input, shape index: {}]
  %s3 = inlined_call_operand.hbm [shape: f32[1,512], index: 3, kind: output, shape index: {}]
  %s4 = sld [smem:[#allocation0]]
  $region34: #{tpu_custom_call.1} parent=0
    _
  %s6 = ssub.s32 1, %s4
  %s7 = scalar_select 0, %s6, %s4
  $region1: #{tpu_custom_call.1} parent=0
    #allocation2 [shape = 'u8[8192]{0}', space=vmem, size = 0x2000, scoped, tag = 'input window, operand 0, single buffered']
    #allocation3 [shape = 's32[1]{0}', space=sflag, size = 0x4, scoped, tag = 'scoped memory for tpu_custom_call.1']
    #allocation4 [shape = 's32[1]{0}', space=sflag, size = 0x4, scoped, tag = 'scoped memory for tpu_custom_call.1']
    #allocation5 [shape = 'u8[524288]{0}', space=vmem, size = 0x80000, scoped, tag = 'input window, operand 1, single buffered']
    #allocation6 [shape = 's32[1]{0}', space=sflag, size = 0x4, scoped, tag = 'scoped memory for tpu_custom_call.1']
    #allocation7 [shape = 'u8[2048]{0}', space=vmem, size = 0x800, scoped, tag = 'input window, operand 2, single buffered']
    #allocation8 [shape = 'u8[2048]{0}', space=vmem, size = 0x800, scoped, tag = 'output window, operand 0, single buffered']
    %8 = vsyncpa [#allocation3], 0
    %9 = vsyncpa [#allocation6], 0
    %10 = vsyncpa [#allocation4], 0
    // Predicated region
    $region2: #{tpu_custom_call.1} parent=1 // pred_check
      _
    $region3: #{tpu_custom_call.1} parent=1 // pred_check_branch
      %12 = sbr.rel (0) target = $region5
    $region4: #{tpu_custom_call.1} parent=1 // pred_region
      %s14 = ssub.s32 256, 256
      %15 = vsyncadd [#allocation3], %s14
      %s17 = sshll.u32 [#allocation2], 4
      %s18 = int_to_ptr.vmem [resolvable:$true] %s17
      %20 = dma.hbm_to_vmem [thread:$0]  %s0, 256, %s18, [#allocation3]
    $region5: #{tpu_custom_call.1} parent=1 // pred_fallthru
      _
    // Predicated region
    $region6: #{tpu_custom_call.1} parent=1 // pred_check
      _
    $region7: #{tpu_custom_call.1} parent=1 // pred_check_branch
      %22 = sbr.rel (0) target = $region9
    $region8: #{tpu_custom_call.1} parent=1 // pred_region
      %s24 = ssub.s32 16384, 16384
      %25 = vsyncadd [#allocation6], %s24
      %s26 = sshll.u32 [#allocation5], 4
      %s27 = int_to_ptr.vmem [resolvable:$true] %s26
      %32 = dma.hbm_to_vmem [thread:$0]  %s1, 16384, %s27, [#allocation6], 256, 256, 16
    $region9: #{tpu_custom_call.1} parent=1 // pred_fallthru
      _
    // Predicated region
    $region10: #{tpu_custom_call.1} parent=1 // pred_check
      _
    $region11: #{tpu_custom_call.1} parent=1 // pred_check_branch
      %34 = sbr.rel (0) target = $region13
    $region12: #{tpu_custom_call.1} parent=1 // pred_region
      %s36 = ssub.s32 64, 64
      %37 = vsyncadd [#allocation6], %s36
      %s39 = sshll.u32 [#allocation7], 4
      %s40 = int_to_ptr.vmem [resolvable:$true] %s39
      %42 = dma.hbm_to_vmem [thread:$0]  %s2, 64, %s40, [#allocation6]
    $region13: #{tpu_custom_call.1} parent=1 // pred_fallthru
      _
    // Predicated region
    $region14: #{tpu_custom_call.1} parent=1 // pred_check
      _
    $region15: #{tpu_custom_call.1} parent=1 // pred_check_branch
      %44 = sbr.rel (0) target = $region17
    $region16: #{tpu_custom_call.1} parent=1 // pred_region
      %45 = dma.done [#allocation3], 256
    $region17: #{tpu_custom_call.1} parent=1 // pred_fallthru
      _
    // Predicated region
    $region18: #{tpu_custom_call.1} parent=1 // pred_check
      _
    $region19: #{tpu_custom_call.1} parent=1 // pred_check_branch
      %47 = sbr.rel (0) target = $region21
    $region20: #{tpu_custom_call.1} parent=1 // pred_region
      %48 = dma.done [#allocation6], 16384
    $region21: #{tpu_custom_call.1} parent=1 // pred_fallthru
      _
    // Predicated region
    $region22: #{tpu_custom_call.1} parent=1 // pred_check
      _
    $region23: #{tpu_custom_call.1} parent=1 // pred_check_branch
      %50 = sbr.rel (0) target = $region25
    $region24: #{tpu_custom_call.1} parent=1 // pred_region
      %51 = dma.done [#allocation6], 64
    $region25: #{tpu_custom_call.1} parent=1 // pred_fallthru
      _
    %v52 = vld [vmem:[#allocation2] sm:$0xff]
    %v53 = vld [vmem:[#allocation2 + $0x8] sm:$0xff]
    %v56 = vcombine.high %v52, %v52
    %v57 = vcombine.high %v53, %v53
    %vm60 = vcmask 1043456
    %v61 = vsel %vm60, %v52, 0.0
    %v62 = vrot.slane %v61, 4
    %v63 = vadd.f32 %v61, %v62
    %v64 = vrot.slane %v63, 2
    %v65 = vadd.f32 %v63, %v64
    %v66 = vrot.slane %v65, 1
    %v67 = vadd.f32 %v65, %v66
    %v68 = vsel %vm60, %v56, 0.0
    %v69 = vrot.slane %v68, 4
    %v70 = vadd.f32 %v68, %v69
    %v71 = vrot.slane %v70, 2
    %v72 = vadd.f32 %v70, %v71
    %v73 = vrot.slane %v72, 1
    %v74 = vadd.f32 %v72, %v73
    %v75 = vsel %vm60, %v53, 0.0
    %v76 = vrot.slane %v75, 4
    %v77 = vadd.f32 %v75, %v76
    %v78 = vrot.slane %v77, 2
    %v79 = vadd.f32 %v77, %v78
    %v80 = vrot.slane %v79, 1
    %v81 = vadd.f32 %v79, %v80
    %v82 = vsel %vm60, %v57, 0.0
    %v83 = vrot.slane %v82, 4
    %v84 = vadd.f32 %v82, %v83
    %v85 = vrot.slane %v84, 2
    %v86 = vadd.f32 %v84, %v85
    %v87 = vrot.slane %v86, 1
    %v88 = vadd.f32 %v86, %v87
    %v89 = vrcp.pop 4.0
    %v90 = vmul.f32 %v67, %v89
    %v91 = vmul.f32 %v74, %v89
    %v92 = vmul.f32 %v81, %v89
    %v93 = vmul.f32 %v88, %v89
    %v94 = vpack.c.bf16 %v90, %v90
    %v95 = vpack.c.bf16 %v91, %v91
    %v96 = vpack.c.bf16 %v92, %v92
    %v97 = vpack.c.bf16 %v93, %v93
    %v98 = vld [vmem:[#allocation5] sm:$0xff]
    %v99 = vld [vmem:[#allocation5 + $0x8] sm:$0xff]
    %v100 = vld [vmem:[#allocation5 + $0x10] sm:$0xff]
    %v101 = vld [vmem:[#allocation5 + $0x18] sm:$0xff]
    %v102 = vld [vmem:[#allocation5 + $0x20] sm:$0xff]
    %v103 = vld [vmem:[#allocation5 + $0x28] sm:$0xff]
    %v104 = vld [vmem:[#allocation5 + $0x30] sm:$0xff]
    %v105 = vld [vmem:[#allocation5 + $0x38] sm:$0xff]
    %v106 = vld [vmem:[#allocation5 + $0x40] sm:$0xff]
    %v107 = vld [vmem:[#allocation5 + $0x48] sm:$0xff]
    %v108 = vld [vmem:[#allocation5 + $0x50] sm:$0xff]
    %v109 = vld [vmem:[#allocation5 + $0x58] sm:$0xff]
    %v110 = vld [vmem:[#allocation5 + $0x60] sm:$0xff]
    %v111 = vld [vmem:[#allocation5 + $0x68] sm:$0xff]
    %v112 = vld [vmem:[#allocation5 + $0x70] sm:$0xff]
    %v113 = vld [vmem:[#allocation5 + $0x78] sm:$0xff]
    %v114 = vld [vmem:[#allocation5 + $0x80] sm:$0xff]
    %v115 = vld [vmem:[#allocation5 + $0x88] sm:$0xff]
    %v116 = vld [vmem:[#allocation5 + $0x90] sm:$0xff]
    %v117 = vld [vmem:[#allocation5 + $0x98] sm:$0xff]
    %v118 = vld [vmem:[#allocation5 + $0xa0] sm:$0xff]
    %v119 = vld [vmem:[#allocation5 + $0xa8] sm:$0xff]
    %v120 = vld [vmem:[#allocation5 + $0xb0] sm:$0xff]
    %v121 = vld [vmem:[#allocation5 + $0xb8] sm:$0xff]
    %v122 = vld [vmem:[#allocation5 + $0xc0] sm:$0xff]
    %v123 = vld [vmem:[#allocation5 + $0xc8] sm:$0xff]
    %v124 = vld [vmem:[#allocation5 + $0xd0] sm:$0xff]
    %v125 = vld [vmem:[#allocation5 + $0xd8] sm:$0xff]
    %v126 = vld [vmem:[#allocation5 + $0xe0] sm:$0xff]
    %v127 = vld [vmem:[#allocation5 + $0xe8] sm:$0xff]
    %v128 = vld [vmem:[#allocation5 + $0xf0] sm:$0xff]
    %v129 = vld [vmem:[#allocation5 + $0xf8] sm:$0xff]
    %v130 = vld [vmem:[#allocation5 + $0x100] sm:$0xff]
    %v131 = vld [vmem:[#allocation5 + $0x108] sm:$0xff]
    %v132 = vld [vmem:[#allocation5 + $0x110] sm:$0xff]
    %v133 = vld [vmem:[#allocation5 + $0x118] sm:$0xff]
    %v134 = vld [vmem:[#allocation5 + $0x120] sm:$0xff]
    %v135 = vld [vmem:[#allocation5 + $0x128] sm:$0xff]
    %v136 = vld [vmem:[#allocation5 + $0x130] sm:$0xff]
    %v137 = vld [vmem:[#allocation5 + $0x138] sm:$0xff]
    %v138 = vld [vmem:[#allocation5 + $0x140] sm:$0xff]
    %v139 = vld [vmem:[#allocation5 + $0x148] sm:$0xff]
    %v140 = vld [vmem:[#allocation5 + $0x150] sm:$0xff]
    %v141 = vld [vmem:[#allocation5 + $0x158] sm:$0xff]
    %v142 = vld [vmem:[#allocation5 + $0x160] sm:$0xff]
    %v143 = vld [vmem:[#allocation5 + $0x168] sm:$0xff]
    %v144 = vld [vmem:[#allocation5 + $0x170] sm:$0xff]
    %v145 = vld [vmem:[#allocation5 + $0x178] sm:$0xff]
    %v146 = vld [vmem:[#allocation5 + $0x180] sm:$0xff]
    %v147 = vld [vmem:[#allocation5 + $0x188] sm:$0xff]
    %v148 = vld [vmem:[#allocation5 + $0x190] sm:$0xff]
    %v149 = vld [vmem:[#allocation5 + $0x198] sm:$0xff]
    %v150 = vld [vmem:[#allocation5 + $0x1a0] sm:$0xff]
    %v151 = vld [vmem:[#allocation5 + $0x1a8] sm:$0xff]
    %v152 = vld [vmem:[#allocation5 + $0x1b0] sm:$0xff]
    %v153 = vld [vmem:[#allocation5 + $0x1b8] sm:$0xff]
    %v154 = vld [vmem:[#allocation5 + $0x1c0] sm:$0xff]
    %v155 = vld [vmem:[#allocation5 + $0x1c8] sm:$0xff]
    %v156 = vld [vmem:[#allocation5 + $0x1d0] sm:$0xff]
    %v157 = vld [vmem:[#allocation5 + $0x1d8] sm:$0xff]
    %v158 = vld [vmem:[#allocation5 + $0x1e0] sm:$0xff]
    %v159 = vld [vmem:[#allocation5 + $0x1e8] sm:$0xff]
    %v160 = vld [vmem:[#allocation5 + $0x1f0] sm:$0xff]
    %v161 = vld [vmem:[#allocation5 + $0x1f8] sm:$0xff]
    %v162 = vld [vmem:[#allocation5 + $0x200] sm:$0xff]
    %v163 = vld [vmem:[#allocation5 + $0x208] sm:$0xff]
    %v164 = vld [vmem:[#allocation5 + $0x210] sm:$0xff]
    %v165 = vld [vmem:[#allocation5 + $0x218] sm:$0xff]
    %v166 = vld [vmem:[#allocation5 + $0x220] sm:$0xff]
    %v167 = vld [vmem:[#allocation5 + $0x228] sm:$0xff]
    %v168 = vld [vmem:[#allocation5 + $0x230] sm:$0xff]
    %v169 = vld [vmem:[#allocation5 + $0x238] sm:$0xff]
    %v170 = vld [vmem:[#allocation5 + $0x240] sm:$0xff]
    %v171 = vld [vmem:[#allocation5 + $0x248] sm:$0xff]
    %v172 = vld [vmem:[#allocation5 + $0x250] sm:$0xff]
    %v173 = vld [vmem:[#allocation5 + $0x258] sm:$0xff]
    %v174 = vld [vmem:[#allocation5 + $0x260] sm:$0xff]
    %v175 = vld [vmem:[#allocation5 + $0x268] sm:$0xff]
    %v176 = vld [vmem:[#allocation5 + $0x270] sm:$0xff]
    %v177 = vld [vmem:[#allocation5 + $0x278] sm:$0xff]
    %v178 = vld [vmem:[#allocation5 + $0x280] sm:$0xff]
    %v179 = vld [vmem:[#allocation5 + $0x288] sm:$0xff]
    %v180 = vld [vmem:[#allocation5 + $0x290] sm:$0xff]
    %v181 = vld [vmem:[#allocation5 + $0x298] sm:$0xff]
    %v182 = vld [vmem:[#allocation5 + $0x2a0] sm:$0xff]
    %v183 = vld [vmem:[#allocation5 + $0x2a8] sm:$0xff]
    %v184 = vld [vmem:[#allocation5 + $0x2b0] sm:$0xff]
    %v185 = vld [vmem:[#allocation5 + $0x2b8] sm:$0xff]
    %v186 = vld [vmem:[#allocation5 + $0x2c0] sm:$0xff]
    %v187 = vld [vmem:[#allocation5 + $0x2c8] sm:$0xff]
    %v188 = vld [vmem:[#allocation5 + $0x2d0] sm:$0xff]
    %v189 = vld [vmem:[#allocation5 + $0x2d8] sm:$0xff]
    %v190 = vld [vmem:[#allocation5 + $0x2e0] sm:$0xff]
    %v191 = vld [vmem:[#allocation5 + $0x2e8] sm:$0xff]
    %v192 = vld [vmem:[#allocation5 + $0x2f0] sm:$0xff]
    %v193 = vld [vmem:[#allocation5 + $0x2f8] sm:$0xff]
    %v194 = vld [vmem:[#allocation5 + $0x300] sm:$0xff]
    %v195 = vld [vmem:[#allocation5 + $0x308] sm:$0xff]
    %v196 = vld [vmem:[#allocation5 + $0x310] sm:$0xff]
    %v197 = vld [vmem:[#allocation5 + $0x318] sm:$0xff]
    %v198 = vld [vmem:[#allocation5 + $0x320] sm:$0xff]
    %v199 = vld [vmem:[#allocation5 + $0x328] sm:$0xff]
    %v200 = vld [vmem:[#allocation5 + $0x330] sm:$0xff]
    %v201 = vld [vmem:[#allocation5 + $0x338] sm:$0xff]
    %v202 = vld [vmem:[#allocation5 + $0x340] sm:$0xff]
    %v203 = vld [vmem:[#allocation5 + $0x348] sm:$0xff]
    %v204 = vld [vmem:[#allocation5 + $0x350] sm:$0xff]
    %v205 = vld [vmem:[#allocation5 + $0x358] sm:$0xff]
    %v206 = vld [vmem:[#allocation5 + $0x360] sm:$0xff]
    %v207 = vld [vmem:[#allocation5 + $0x368] sm:$0xff]
    %v208 = vld [vmem:[#allocation5 + $0x370] sm:$0xff]
    %v209 = vld [vmem:[#allocation5 + $0x378] sm:$0xff]
    %v210 = vld [vmem:[#allocation5 + $0x380] sm:$0xff]
    %v211 = vld [vmem:[#allocation5 + $0x388] sm:$0xff]
    %v212 = vld [vmem:[#allocation5 + $0x390] sm:$0xff]
    %v213 = vld [vmem:[#allocation5 + $0x398] sm:$0xff]
    %v214 = vld [vmem:[#allocation5 + $0x3a0] sm:$0xff]
    %v215 = vld [vmem:[#allocation5 + $0x3a8] sm:$0xff]
    %v216 = vld [vmem:[#allocation5 + $0x3b0] sm:$0xff]
    %v217 = vld [vmem:[#allocation5 + $0x3b8] sm:$0xff]
    %v218 = vld [vmem:[#allocation5 + $0x3c0] sm:$0xff]
    %v219 = vld [vmem:[#allocation5 + $0x3c8] sm:$0xff]
    %v220 = vld [vmem:[#allocation5 + $0x3d0] sm:$0xff]
    %v221 = vld [vmem:[#allocation5 + $0x3d8] sm:$0xff]
    %v222 = vld [vmem:[#allocation5 + $0x3e0] sm:$0xff]
    %v223 = vld [vmem:[#allocation5 + $0x3e8] sm:$0xff]
    %v224 = vld [vmem:[#allocation5 + $0x3f0] sm:$0xff]
    %v225 = vld [vmem:[#allocation5 + $0x3f8] sm:$0xff]
    %v226 = vld [vmem:[#allocation7] sm:$0xf]
    %v355 = vunpack.c.l.b16 %v98
    %v356 = vunpack.c.h.b16 %v98
    %v357 = vunpack.c.l.b16 %v99
    %v358 = vunpack.c.h.b16 %v99
    %v359 = vunpack.c.l.b16 %v100
    %v360 = vunpack.c.h.b16 %v100
    %v361 = vunpack.c.l.b16 %v101
    %v362 = vunpack.c.h.b16 %v101
    %v363 = vunpack.c.l.b16 %v102
    %v364 = vunpack.c.h.b16 %v102
    %v365 = vunpack.c.l.b16 %v103
    %v366 = vunpack.c.h.b16 %v103
    %v367 = vunpack.c.l.b16 %v104
    %v368 = vunpack.c.h.b16 %v104
    %v369 = vunpack.c.l.b16 %v105
    %v370 = vunpack.c.h.b16 %v105
    %v371 = vunpack.c.l.b16 %v106
    %v372 = vunpack.c.h.b16 %v106
    %v373 = vunpack.c.l.b16 %v107
    %v374 = vunpack.c.h.b16 %v107
    %v375 = vunpack.c.l.b16 %v108
    %v376 = vunpack.c.h.b16 %v108
    %v377 = vunpack.c.l.b16 %v109
    %v378 = vunpack.c.h.b16 %v109
    %v379 = vunpack.c.l.b16 %v110
    %v380 = vunpack.c.h.b16 %v110
    %v381 = vunpack.c.l.b16 %v111
    %v382 = vunpack.c.h.b16 %v111
    %v383 = vunpack.c.l.b16 %v112
    %v384 = vunpack.c.h.b16 %v112
    %v385 = vunpack.c.l.b16 %v113
    %v386 = vunpack.c.h.b16 %v113
    %v387 = vunpack.c.l.b16 %v114
    %v388 = vunpack.c.h.b16 %v114
    %v389 = vunpack.c.l.b16 %v115
    %v390 = vunpack.c.h.b16 %v115
    %v391 = vunpack.c.l.b16 %v116
    %v392 = vunpack.c.h.b16 %v116
    %v393 = vunpack.c.l.b16 %v117
    %v394 = vunpack.c.h.b16 %v117
    %v395 = vunpack.c.l.b16 %v118
    %v396 = vunpack.c.h.b16 %v118
    %v397 = vunpack.c.l.b16 %v119
    %v398 = vunpack.c.h.b16 %v119
    %v399 = vunpack.c.l.b16 %v120
    %v400 = vunpack.c.h.b16 %v120
    %v401 = vunpack.c.l.b16 %v121
    %v402 = vunpack.c.h.b16 %v121
    %v403 = vunpack.c.l.b16 %v122
    %v404 = vunpack.c.h.b16 %v122
    %v405 = vunpack.c.l.b16 %v123
    %v406 = vunpack.c.h.b16 %v123
    %v407 = vunpack.c.l.b16 %v124
    %v408 = vunpack.c.h.b16 %v124
    %v409 = vunpack.c.l.b16 %v125
    %v410 = vunpack.c.h.b16 %v125
    %v411 = vunpack.c.l.b16 %v126
    %v412 = vunpack.c.h.b16 %v126
    %v413 = vunpack.c.l.b16 %v127
    %v414 = vunpack.c.h.b16 %v127
    %v415 = vunpack.c.l.b16 %v128
    %v416 = vunpack.c.h.b16 %v128
    %v417 = vunpack.c.l.b16 %v129
    %v418 = vunpack.c.h.b16 %v129
    %v419 = vunpack.c.l.b16 %v130
    %v420 = vunpack.c.h.b16 %v130
    %v421 = vunpack.c.l.b16 %v131
    %v422 = vunpack.c.h.b16 %v131
    %v423 = vunpack.c.l.b16 %v132
    %v424 = vunpack.c.h.b16 %v132
    %v425 = vunpack.c.l.b16 %v133
    %v426 = vunpack.c.h.b16 %v133
    %v427 = vunpack.c.l.b16 %v134
    %v428 = vunpack.c.h.b16 %v134
    %v429 = vunpack.c.l.b16 %v135
    %v430 = vunpack.c.h.b16 %v135
    %v431 = vunpack.c.l.b16 %v136
    %v432 = vunpack.c.h.b16 %v136
    %v433 = vunpack.c.l.b16 %v137
    %v434 = vunpack.c.h.b16 %v137
    %v435 = vunpack.c.l.b16 %v138
    %v436 = vunpack.c.h.b16 %v138
    %v437 = vunpack.c.l.b16 %v139
    %v438 = vunpack.c.h.b16 %v139
    %v439 = vunpack.c.l.b16 %v140
    %v440 = vunpack.c.h.b16 %v140
    %v441 = vunpack.c.l.b16 %v141
    %v442 = vunpack.c.h.b16 %v141
    %v443 = vunpack.c.l.b16 %v142
    %v444 = vunpack.c.h.b16 %v142
    %v445 = vunpack.c.l.b16 %v143
    %v446 = vunpack.c.h.b16 %v143
    %v447 = vunpack.c.l.b16 %v144
    %v448 = vunpack.c.h.b16 %v144
    %v449 = vunpack.c.l.b16 %v145
    %v450 = vunpack.c.h.b16 %v145
    %v451 = vunpack.c.l.b16 %v146
    %v452 = vunpack.c.h.b16 %v146
    %v453 = vunpack.c.l.b16 %v147
    %v454 = vunpack.c.h.b16 %v147
    %v455 = vunpack.c.l.b16 %v148
    %v456 = vunpack.c.h.b16 %v148
    %v457 = vunpack.c.l.b16 %v149
    %v458 = vunpack.c.h.b16 %v149
    %v459 = vunpack.c.l.b16 %v150
    %v460 = vunpack.c.h.b16 %v150
    %v461 = vunpack.c.l.b16 %v151
    %v462 = vunpack.c.h.b16 %v151
    %v463 = vunpack.c.l.b16 %v152
    %v464 = vunpack.c.h.b16 %v152
    %v465 = vunpack.c.l.b16 %v153
    %v466 = vunpack.c.h.b16 %v153
    %v467 = vunpack.c.l.b16 %v154
    %v468 = vunpack.c.h.b16 %v154
    %v469 = vunpack.c.l.b16 %v155
    %v470 = vunpack.c.h.b16 %v155
    %v471 = vunpack.c.l.b16 %v156
    %v472 = vunpack.c.h.b16 %v156
    %v473 = vunpack.c.l.b16 %v157
    %v474 = vunpack.c.h.b16 %v157
    %v475 = vunpack.c.l.b16 %v158
    %v476 = vunpack.c.h.b16 %v158
    %v477 = vunpack.c.l.b16 %v159
    %v478 = vunpack.c.h.b16 %v159
    %v479 = vunpack.c.l.b16 %v160
    %v480 = vunpack.c.h.b16 %v160
    %v481 = vunpack.c.l.b16 %v161
    %v482 = vunpack.c.h.b16 %v161
    %v483 = vunpack.c.l.b16 %v162
    %v484 = vunpack.c.h.b16 %v162
    %v485 = vunpack.c.l.b16 %v163
    %v486 = vunpack.c.h.b16 %v163
    %v487 = vunpack.c.l.b16 %v164
    %v488 = vunpack.c.h.b16 %v164
    %v489 = vunpack.c.l.b16 %v165
    %v490 = vunpack.c.h.b16 %v165
    %v491 = vunpack.c.l.b16 %v166
    %v492 = vunpack.c.h.b16 %v166
    %v493 = vunpack.c.l.b16 %v167
    %v494 = vunpack.c.h.b16 %v167
    %v495 = vunpack.c.l.b16 %v168
    %v496 = vunpack.c.h.b16 %v168
    %v497 = vunpack.c.l.b16 %v169
    %v498 = vunpack.c.h.b16 %v169
    %v499 = vunpack.c.l.b16 %v170
    %v500 = vunpack.c.h.b16 %v170
    %v501 = vunpack.c.l.b16 %v171
    %v502 = vunpack.c.h.b16 %v171
    %v503 = vunpack.c.l.b16 %v172
    %v504 = vunpack.c.h.b16 %v172
    %v505 = vunpack.c.l.b16 %v173
    %v506 = vunpack.c.h.b16 %v173
    %v507 = vunpack.c.l.b16 %v174
    %v508 = vunpack.c.h.b16 %v174
    %v509 = vunpack.c.l.b16 %v175
    %v510 = vunpack.c.h.b16 %v175
    %v511 = vunpack.c.l.b16 %v176
    %v512 = vunpack.c.h.b16 %v176
    %v513 = vunpack.c.l.b16 %v177
    %v514 = vunpack.c.h.b16 %v177
    %v515 = vunpack.c.l.b16 %v178
    %v516 = vunpack.c.h.b16 %v178
    %v517 = vunpack.c.l.b16 %v179
    %v518 = vunpack.c.h.b16 %v179
    %v519 = vunpack.c.l.b16 %v180
    %v520 = vunpack.c.h.b16 %v180
    %v521 = vunpack.c.l.b16 %v181
    %v522 = vunpack.c.h.b16 %v181
    %v523 = vunpack.c.l.b16 %v182
    %v524 = vunpack.c.h.b16 %v182
    %v525 = vunpack.c.l.b16 %v183
    %v526 = vunpack.c.h.b16 %v183
    %v527 = vunpack.c.l.b16 %v184
    %v528 = vunpack.c.h.b16 %v184
    %v529 = vunpack.c.l.b16 %v185
    %v530 = vunpack.c.h.b16 %v185
    %v531 = vunpack.c.l.b16 %v186
    %v532 = vunpack.c.h.b16 %v186
    %v533 = vunpack.c.l.b16 %v187
    %v534 = vunpack.c.h.b16 %v187
    %v535 = vunpack.c.l.b16 %v188
    %v536 = vunpack.c.h.b16 %v188
    %v537 = vunpack.c.l.b16 %v189
    %v538 = vunpack.c.h.b16 %v189
    %v539 = vunpack.c.l.b16 %v190
    %v540 = vunpack.c.h.b16 %v190
    %v541 = vunpack.c.l.b16 %v191
    %v542 = vunpack.c.h.b16 %v191
    %v543 = vunpack.c.l.b16 %v192
    %v544 = vunpack.c.h.b16 %v192
    %v545 = vunpack.c.l.b16 %v193
    %v546 = vunpack.c.h.b16 %v193
    %v547 = vunpack.c.l.b16 %v194
    %v548 = vunpack.c.h.b16 %v194
    %v549 = vunpack.c.l.b16 %v195
    %v550 = vunpack.c.h.b16 %v195
    %v551 = vunpack.c.l.b16 %v196
    %v552 = vunpack.c.h.b16 %v196
    %v553 = vunpack.c.l.b16 %v197
    %v554 = vunpack.c.h.b16 %v197
    %v555 = vunpack.c.l.b16 %v198
    %v556 = vunpack.c.h.b16 %v198
    %v557 = vunpack.c.l.b16 %v199
    %v558 = vunpack.c.h.b16 %v199
    %v559 = vunpack.c.l.b16 %v200
    %v560 = vunpack.c.h.b16 %v200
    %v561 = vunpack.c.l.b16 %v201
    %v562 = vunpack.c.h.b16 %v201
    %v563 = vunpack.c.l.b16 %v202
    %v564 = vunpack.c.h.b16 %v202
    %v565 = vunpack.c.l.b16 %v203
    %v566 = vunpack.c.h.b16 %v203
    %v567 = vunpack.c.l.b16 %v204
    %v568 = vunpack.c.h.b16 %v204
    %v569 = vunpack.c.l.b16 %v205
    %v570 = vunpack.c.h.b16 %v205
    %v571 = vunpack.c.l.b16 %v206
    %v572 = vunpack.c.h.b16 %v206
    %v573 = vunpack.c.l.b16 %v207
    %v574 = vunpack.c.h.b16 %v207
    %v575 = vunpack.c.l.b16 %v208
    %v576 = vunpack.c.h.b16 %v208
    %v577 = vunpack.c.l.b16 %v209
    %v578 = vunpack.c.h.b16 %v209
    %v579 = vunpack.c.l.b16 %v210
    %v580 = vunpack.c.h.b16 %v210
    %v581 = vunpack.c.l.b16 %v211
    %v582 = vunpack.c.h.b16 %v211
    %v583 = vunpack.c.l.b16 %v212
    %v584 = vunpack.c.h.b16 %v212
    %v585 = vunpack.c.l.b16 %v213
    %v586 = vunpack.c.h.b16 %v213
    %v587 = vunpack.c.l.b16 %v214
    %v588 = vunpack.c.h.b16 %v214
    %v589 = vunpack.c.l.b16 %v215
    %v590 = vunpack.c.h.b16 %v215
    %v591 = vunpack.c.l.b16 %v216
    %v592 = vunpack.c.h.b16 %v216
    %v593 = vunpack.c.l.b16 %v217
    %v594 = vunpack.c.h.b16 %v217
    %v595 = vunpack.c.l.b16 %v218
    %v596 = vunpack.c.h.b16 %v218
    %v597 = vunpack.c.l.b16 %v219
    %v598 = vunpack.c.h.b16 %v219
    %v599 = vunpack.c.l.b16 %v220
    %v600 = vunpack.c.h.b16 %v220
    %v601 = vunpack.c.l.b16 %v221
    %v602 = vunpack.c.h.b16 %v221
    %v603 = vunpack.c.l.b16 %v222
    %v604 = vunpack.c.h.b16 %v222
    %v605 = vunpack.c.l.b16 %v223
    %v606 = vunpack.c.h.b16 %v223
    %v607 = vunpack.c.l.b16 %v224
    %v608 = vunpack.c.h.b16 %v224
    %v609 = vunpack.c.l.b16 %v225
    %v610 = vunpack.c.h.b16 %v225
    %v611 = vpack.c.b16 %v359, %v355
    %v612 = vpack.c.b16 %v360, %v356
    %v613 = vpack.c.b16 %v361, %v357
    %v614 = vpack.c.b16 %v362, %v358
    %v615 = vpack.c.b16 %v367, %v363
    %v616 = vpack.c.b16 %v368, %v364
    %v617 = vpack.c.b16 %v369, %v365
    %v618 = vpack.c.b16 %v370, %v366
    %v619 = vpack.c.b16 %v375, %v371
    %v620 = vpack.c.b16 %v376, %v372
    %v621 = vpack.c.b16 %v377, %v373
    %v622 = vpack.c.b16 %v378, %v374
    %v623 = vpack.c.b16 %v383, %v379
    %v624 = vpack.c.b16 %v384, %v380
    %v625 = vpack.c.b16 %v385, %v381
    %v626 = vpack.c.b16 %v386, %v382
    %v627 = vpack.c.b16 %v391, %v387
    %v628 = vpack.c.b16 %v392, %v388
    %v629 = vpack.c.b16 %v393, %v389
    %v630 = vpack.c.b16 %v394, %v390
    %v631 = vpack.c.b16 %v399, %v395
    %v632 = vpack.c.b16 %v400, %v396
    %v633 = vpack.c.b16 %v401, %v397
    %v634 = vpack.c.b16 %v402, %v398
    %v635 = vpack.c.b16 %v407, %v403
    %v636 = vpack.c.b16 %v408, %v404
    %v637 = vpack.c.b16 %v409, %v405
    %v638 = vpack.c.b16 %v410, %v406
    %v639 = vpack.c.b16 %v415, %v411
    %v640 = vpack.c.b16 %v416, %v412
    %v641 = vpack.c.b16 %v417, %v413
    %v642 = vpack.c.b16 %v418, %v414
    %v643 = vpack.c.b16 %v423, %v419
    %v644 = vpack.c.b16 %v424, %v420
    %v645 = vpack.c.b16 %v425, %v421
    %v646 = vpack.c.b16 %v426, %v422
    %v647 = vpack.c.b16 %v431, %v427
    %v648 = vpack.c.b16 %v432, %v428
    %v649 = vpack.c.b16 %v433, %v429
    %v650 = vpack.c.b16 %v434, %v430
    %v651 = vpack.c.b16 %v439, %v435
    %v652 = vpack.c.b16 %v440, %v436
    %v653 = vpack.c.b16 %v441, %v437
    %v654 = vpack.c.b16 %v442, %v438
    %v655 = vpack.c.b16 %v447, %v443
    %v656 = vpack.c.b16 %v448, %v444
    %v657 = vpack.c.b16 %v449, %v445
    %v658 = vpack.c.b16 %v450, %v446
    %v659 = vpack.c.b16 %v455, %v451
    %v660 = vpack.c.b16 %v456, %v452
    %v661 = vpack.c.b16 %v457, %v453
    %v662 = vpack.c.b16 %v458, %v454
    %v663 = vpack.c.b16 %v463, %v459
    %v664 = vpack.c.b16 %v464, %v460
    %v665 = vpack.c.b16 %v465, %v461
    %v666 = vpack.c.b16 %v466, %v462
    %v667 = vpack.c.b16 %v471, %v467
    %v668 = vpack.c.b16 %v472, %v468
    %v669 = vpack.c.b16 %v473, %v469
    %v670 = vpack.c.b16 %v474, %v470
    %v671 = vpack.c.b16 %v479, %v475
    %v672 = vpack.c.b16 %v480, %v476
    %v673 = vpack.c.b16 %v481, %v477
    %v674 = vpack.c.b16 %v482, %v478
    %v675 = vpack.c.b16 %v487, %v483
    %v676 = vpack.c.b16 %v488, %v484
    %v677 = vpack.c.b16 %v489, %v485
    %v678 = vpack.c.b16 %v490, %v486
    %v679 = vpack.c.b16 %v495, %v491
    %v680 = vpack.c.b16 %v496, %v492
    %v681 = vpack.c.b16 %v497, %v493
    %v682 = vpack.c.b16 %v498, %v494
    %v683 = vpack.c.b16 %v503, %v499
    %v684 = vpack.c.b16 %v504, %v500
    %v685 = vpack.c.b16 %v505, %v501
    %v686 = vpack.c.b16 %v506, %v502
    %v687 = vpack.c.b16 %v511, %v507
    %v688 = vpack.c.b16 %v512, %v508
    %v689 = vpack.c.b16 %v513, %v509
    %v690 = vpack.c.b16 %v514, %v510
    %v691 = vpack.c.b16 %v519, %v515
    %v692 = vpack.c.b16 %v520, %v516
    %v693 = vpack.c.b16 %v521, %v517
    %v694 = vpack.c.b16 %v522, %v518
    %v695 = vpack.c.b16 %v527, %v523
    %v696 = vpack.c.b16 %v528, %v524
    %v697 = vpack.c.b16 %v529, %v525
    %v698 = vpack.c.b16 %v530, %v526
    %v699 = vpack.c.b16 %v535, %v531
    %v700 = vpack.c.b16 %v536, %v532
    %v701 = vpack.c.b16 %v537, %v533
    %v702 = vpack.c.b16 %v538, %v534
    %v703 = vpack.c.b16 %v543, %v539
    %v704 = vpack.c.b16 %v544, %v540
    %v705 = vpack.c.b16 %v545, %v541
    %v706 = vpack.c.b16 %v546, %v542
    %v707 = vpack.c.b16 %v551, %v547
    %v708 = vpack.c.b16 %v552, %v548
    %v709 = vpack.c.b16 %v553, %v549
    %v710 = vpack.c.b16 %v554, %v550
    %v711 = vpack.c.b16 %v559, %v555
    %v712 = vpack.c.b16 %v560, %v556
    %v713 = vpack.c.b16 %v561, %v557
    %v714 = vpack.c.b16 %v562, %v558
    %v715 = vpack.c.b16 %v567, %v563
    %v716 = vpack.c.b16 %v568, %v564
    %v717 = vpack.c.b16 %v569, %v565
    %v718 = vpack.c.b16 %v570, %v566
    %v719 = vpack.c.b16 %v575, %v571
    %v720 = vpack.c.b16 %v576, %v572
    %v721 = vpack.c.b16 %v577, %v573
    %v722 = vpack.c.b16 %v578, %v574
    %v723 = vpack.c.b16 %v583, %v579
    %v724 = vpack.c.b16 %v584, %v580
    %v725 = vpack.c.b16 %v585, %v581
    %v726 = vpack.c.b16 %v586, %v582
    %v727 = vpack.c.b16 %v591, %v587
    %v728 = vpack.c.b16 %v592, %v588
    %v729 = vpack.c.b16 %v593, %v589
    %v730 = vpack.c.b16 %v594, %v590
    %v731 = vpack.c.b16 %v599, %v595
    %v732 = vpack.c.b16 %v600, %v596
    %v733 = vpack.c.b16 %v601, %v597
    %v734 = vpack.c.b16 %v602, %v598
    %v735 = vpack.c.b16 %v607, %v603
    %v736 = vpack.c.b16 %v608, %v604
    %v737 = vpack.c.b16 %v609, %v605
    %v738 = vpack.c.b16 %v610, %v606
    %v868 = vlaneseq
    %v869 = vshrl.u32 %v868, 7
    %v870 = vsub.s32 0, %v869
    %v871 = vrot.slane %v226, %v870
    %v872 = vlaneseq
    %v873 = vshrl.u32 %v872, 7
    %v874 = vsub.s32 1, %v873
    %v875 = vrot.slane %v226, %v874
    %v876 = vlaneseq
    %v877 = vshrl.u32 %v876, 7
    %v878 = vsub.s32 2, %v877
    %v879 = vrot.slane %v226, %v878
    %v880 = vlaneseq
    %v881 = vshrl.u32 %v880, 7
    %v882 = vsub.s32 3, %v881
    %v883 = vrot.slane %v226, %v882
    %888 = vmatprep.subr.bf16.mxu0 %v640
    %889 = vmatpush1.bf16.msra.mxu0 %v639
    %890 = vmatprep.subr.bf16.mxu0 %v636
    %891 = vmatpush1.bf16.msra.mxu0 %v635
    %892 = vmatprep.subr.bf16.mxu0 %v632
    %893 = vmatpush1.bf16.msra.mxu0 %v631
    %894 = vmatprep.subr.bf16.mxu0 %v628
    %895 = vmatpush1.bf16.msra.mxu0 %v627
    %896 = vmatprep.subr.bf16.mxu0 %v624
    %897 = vmatpush1.bf16.msra.mxu0 %v623
    %898 = vmatprep.subr.bf16.mxu0 %v620
    %899 = vmatpush1.bf16.msra.mxu0 %v619
    %900 = vmatprep.subr.bf16.mxu0 %v616
    %901 = vmatpush1.bf16.msra.mxu0 %v615
    %902 = vmatprep.subr.bf16.mxu0 %v612
    %903 = vmatpush1.bf16.msra.mxu0 %v611
    %904 = vmatprep.subr.bf16.mxu0 %v672
    %905 = vmatpush2.bf16.msra.mxu0 %v671
    %906 = vmatprep.subr.bf16.mxu0 %v668
    %907 = vmatpush2.bf16.msra.mxu0 %v667
    %908 = vmatprep.subr.bf16.mxu0 %v664
    %909 = vmatpush2.bf16.msra.mxu0 %v663
    %910 = vmatprep.subr.bf16.mxu0 %v660
    %911 = vmatpush2.bf16.msra.mxu0 %v659
    %912 = vmatprep.subr.bf16.mxu0 %v656
    %913 = vmatpush2.bf16.msra.mxu0 %v655
    %914 = vmatprep.subr.bf16.mxu0 %v652
    %915 = vmatpush2.bf16.msra.mxu0 %v651
    %916 = vmatprep.subr.bf16.mxu0 %v648
    %917 = vmatpush2.bf16.msra.mxu0 %v647
    %918 = vmatprep.subr.bf16.mxu0 %v644
    %919 = vmatpush2.bf16.msra.mxu0 %v643
    %920 = vmatprep.mubr.bf16.mxu0 %v95
    %921 = vmatmul.mubr.bf16.gmra.mxu0 %v94
    %v922 = vpop.f32.mrf.mxu0
    %v923 = vadd.f32 %v871, %v922
    %v924 = vpop.f32.mrf.mxu0
    %v925 = vadd.f32 %v875, %v924
    %v926 = vpop.f32.mrf.mxu0
    %v927 = vpop.f32.mrf.mxu0
    %928 = vdwg.mxu0
    %929 = vmatprep.subr.bf16.mxu0 %v704
    %930 = vmatpush1.bf16.msra.mxu0 %v703
    %931 = vmatprep.subr.bf16.mxu0 %v700
    %932 = vmatpush1.bf16.msra.mxu0 %v699
    %933 = vmatprep.subr.bf16.mxu0 %v696
    %934 = vmatpush1.bf16.msra.mxu0 %v695
    %935 = vmatprep.subr.bf16.mxu0 %v692
    %936 = vmatpush1.bf16.msra.mxu0 %v691
    %937 = vmatprep.subr.bf16.mxu0 %v688
    %938 = vmatpush1.bf16.msra.mxu0 %v687
    %939 = vmatprep.subr.bf16.mxu0 %v684
    %940 = vmatpush1.bf16.msra.mxu0 %v683
    %941 = vmatprep.subr.bf16.mxu0 %v680
    %942 = vmatpush1.bf16.msra.mxu0 %v679
    %943 = vmatprep.subr.bf16.mxu0 %v676
    %944 = vmatpush1.bf16.msra.mxu0 %v675
    %945 = vmatprep.subr.bf16.mxu0 %v736
    %946 = vmatpush2.bf16.msra.mxu0 %v735
    %947 = vmatprep.subr.bf16.mxu0 %v732
    %948 = vmatpush2.bf16.msra.mxu0 %v731
    %949 = vmatprep.subr.bf16.mxu0 %v728
    %950 = vmatpush2.bf16.msra.mxu0 %v727
    %951 = vmatprep.subr.bf16.mxu0 %v724
    %952 = vmatpush2.bf16.msra.mxu0 %v723
    %953 = vmatprep.subr.bf16.mxu0 %v720
    %954 = vmatpush2.bf16.msra.mxu0 %v719
    %955 = vmatprep.subr.bf16.mxu0 %v716
    %956 = vmatpush2.bf16.msra.mxu0 %v715
    %957 = vmatprep.subr.bf16.mxu0 %v712
    %958 = vmatpush2.bf16.msra.mxu0 %v711
    %959 = vmatprep.subr.bf16.mxu0 %v708
    %960 = vmatpush2.bf16.msra.mxu0 %v707
    %961 = vmatprep.mubr.bf16.mxu0 %v97
    %962 = vmatmul.mubr.bf16.gmra.mxu0 %v96
    %v963 = vpop.f32.mrf.mxu0
    %v964 = vadd.f32 %v923, %v963
    %v965 = vpop.f32.mrf.mxu0
    %v966 = vadd.f32 %v925, %v965
    %v967 = vpop.f32.mrf.mxu0
    %v968 = vpop.f32.mrf.mxu0
    %969 = vdwg.mxu0
    %970 = vmatprep.subr.bf16.mxu0 %v642
    %971 = vmatpush1.bf16.msra.mxu0 %v641
    %972 = vmatprep.subr.bf16.mxu0 %v638
    %973 = vmatpush1.bf16.msra.mxu0 %v637
    %974 = vmatprep.subr.bf16.mxu0 %v634
    %975 = vmatpush1.bf16.msra.mxu0 %v633
    %976 = vmatprep.subr.bf16.mxu0 %v630
    %977 = vmatpush1.bf16.msra.mxu0 %v629
    %978 = vmatprep.subr.bf16.mxu0 %v626
    %979 = vmatpush1.bf16.msra.mxu0 %v625
    %980 = vmatprep.subr.bf16.mxu0 %v622
    %981 = vmatpush1.bf16.msra.mxu0 %v621
    %982 = vmatprep.subr.bf16.mxu0 %v618
    %983 = vmatpush1.bf16.msra.mxu0 %v617
    %984 = vmatprep.subr.bf16.mxu0 %v614
    %985 = vmatpush1.bf16.msra.mxu0 %v613
    %986 = vmatprep.subr.bf16.mxu0 %v674
    %987 = vmatpush2.bf16.msra.mxu0 %v673
    %988 = vmatprep.subr.bf16.mxu0 %v670
    %989 = vmatpush2.bf16.msra.mxu0 %v669
    %990 = vmatprep.subr.bf16.mxu0 %v666
    %991 = vmatpush2.bf16.msra.mxu0 %v665
    %992 = vmatprep.subr.bf16.mxu0 %v662
    %993 = vmatpush2.bf16.msra.mxu0 %v661
    %994 = vmatprep.subr.bf16.mxu0 %v658
    %995 = vmatpush2.bf16.msra.mxu0 %v657
    %996 = vmatprep.subr.bf16.mxu0 %v654
    %997 = vmatpush2.bf16.msra.mxu0 %v653
    %998 = vmatprep.subr.bf16.mxu0 %v650
    %999 = vmatpush2.bf16.msra.mxu0 %v649
    %1000 = vmatprep.subr.bf16.mxu0 %v646
    %1001 = vmatpush2.bf16.msra.mxu0 %v645
    %1002 = vmatprep.mubr.bf16.mxu0 %v95
    %1003 = vmatmul.mubr.bf16.gmra.mxu0 %v94
    %v1004 = vpop.f32.mrf.mxu0
    %v1005 = vadd.f32 %v879, %v1004
    %v1006 = vpop.f32.mrf.mxu0
    %v1007 = vadd.f32 %v883, %v1006
    %v1008 = vpop.f32.mrf.mxu0
    %v1009 = vpop.f32.mrf.mxu0
    %1010 = vdwg.mxu0
    %1011 = vmatprep.subr.bf16.mxu0 %v706
    %1012 = vmatpush1.bf16.msra.mxu0 %v705
    %1013 = vmatprep.subr.bf16.mxu0 %v702
    %1014 = vmatpush1.bf16.msra.mxu0 %v701
    %1015 = vmatprep.subr.bf16.mxu0 %v698
    %1016 = vmatpush1.bf16.msra.mxu0 %v697
    %1017 = vmatprep.subr.bf16.mxu0 %v694
    %1018 = vmatpush1.bf16.msra.mxu0 %v693
    %1019 = vmatprep.subr.bf16.mxu0 %v690
    %1020 = vmatpush1.bf16.msra.mxu0 %v689
    %1021 = vmatprep.subr.bf16.mxu0 %v686
    %1022 = vmatpush1.bf16.msra.mxu0 %v685
    %1023 = vmatprep.subr.bf16.mxu0 %v682
    %1024 = vmatpush1.bf16.msra.mxu0 %v681
    %1025 = vmatprep.subr.bf16.mxu0 %v678
    %1026 = vmatpush1.bf16.msra.mxu0 %v677
    %1027 = vmatprep.subr.bf16.mxu0 %v738
    %1028 = vmatpush2.bf16.msra.mxu0 %v737
    %1029 = vmatprep.subr.bf16.mxu0 %v734
    %1030 = vmatpush2.bf16.msra.mxu0 %v733
    %1031 = vmatprep.subr.bf16.mxu0 %v730
    %1032 = vmatpush2.bf16.msra.mxu0 %v729
    %1033 = vmatprep.subr.bf16.mxu0 %v726
    %1034 = vmatpush2.bf16.msra.mxu0 %v725
    %1035 = vmatprep.subr.bf16.mxu0 %v722
    %1036 = vmatpush2.bf16.msra.mxu0 %v721
    %1037 = vmatprep.subr.bf16.mxu0 %v718
    %1038 = vmatpush2.bf16.msra.mxu0 %v717
    %1039 = vmatprep.subr.bf16.mxu0 %v714
    %1040 = vmatpush2.bf16.msra.mxu0 %v713
    %1041 = vmatprep.subr.bf16.mxu0 %v710
    %1042 = vmatpush2.bf16.msra.mxu0 %v709
    %1043 = vmatprep.mubr.bf16.mxu0 %v97
    %1044 = vmatmul.mubr.bf16.gmra.mxu0 %v96
    %v1045 = vpop.f32.mrf.mxu0
    %v1046 = vadd.f32 %v1005, %v1045
    %v1047 = vpop.f32.mrf.mxu0
    %v1048 = vadd.f32 %v1007, %v1047
    %v1049 = vpop.f32.mrf.mxu0
    %v1050 = vpop.f32.mrf.mxu0
    %1051 = vdwg.mxu0
    %v1056 = vcombine.low %v964, %v966
    %v1057 = vcombine.low %v1046, %v1048
    %v1059 = vunpack.c.l.s4 1966171168
    %v1060 = vunpack.c.0.s8 %v1059
    %v1061 = vlaneseq
    %v1062 = vshrl.u32 %v1061, 7
    %v1063 = vsub.s32 %v1060, %v1062
    %v1064 = vrot.slane %v1056, %v1063
    %v1066 = vunpack.c.l.s4 1966171168
    %v1067 = vunpack.c.0.s8 %v1066
    %v1068 = vlaneseq
    %v1069 = vshrl.u32 %v1068, 7
    %v1070 = vsub.s32 %v1067, %v1069
    %v1071 = vrot.slane %v1057, %v1070
    %v1072 = vcombine.low %v1064, %v1071
    %v1074 = vunpack.c.l.s4 1966171168
    %v1075 = vunpack.c.0.s8 %v1074
    %v1076 = vlaneseq
    %v1077 = vshrl.u32 %v1076, 7
    %v1078 = vsub.s32 %v1075, %v1077
    %v1079 = vrot.slane %v1072, %v1078
    %v1081 = vlaneseq
    %vm1082 = vcmp.ge.s32.totalorder %v1081, 0
    %vm1083 = vcmp.lt.s32.totalorder %v1081, 512
    %vm1084 = vmand %vm1082, %vm1083
    %1085 = vst.msk [vmem:[#allocation8] sm:$0xf] %vm1084, %v1079
    // Predicated region
    $region26: #{tpu_custom_call.1} parent=1 // pred_check
      _
    $region27: #{tpu_custom_call.1} parent=1 // pred_check_branch
      %1087 = sbr.rel (0) target = $region29
    $region28: #{tpu_custom_call.1} parent=1 // pred_region
      %s1089 = ssub.s32 64, 64
      %1090 = vsyncadd [#allocation4], %s1089
      %s1092 = sshll.u32 [#allocation8], 4
      %s1093 = int_to_ptr.vmem [resolvable:$true] %s1092
      %1095 = dma.vmem_to_hbm [thread:$0]  %s1093, 64, %s3, [#allocation4]
    $region29: #{tpu_custom_call.1} parent=1 // pred_fallthru
      _
    // Predicated region
    $region30: #{tpu_custom_call.1} parent=1 // pred_check
      _
    $region31: #{tpu_custom_call.1} parent=1 // pred_check_branch
      %1097 = sbr.rel (0) target = $region33
    $region32: #{tpu_custom_call.1} parent=1 // pred_region
      %1098 = dma.done [#allocation4], 64
    $region33: #{tpu_custom_call.1} parent=1 // pred_fallthru
      _
    %1099 = vsyncpa [#allocation3], 1
    %1100 = vsyncpa [#allocation6], 1
    %1101 = vsyncpa [#allocation4], 1

</llo_original>
